<compile_context>
chip_gen: v7x
topology: tpu7x:2x2x1
jax: 0.10.0
libtpu: 0.0.40
codegen_flags: <defaults>
</compile_context>

<pallas_src>
import functools

import jax
import jax.numpy as jnp
from jax import lax
from jax.experimental import pallas as pl
from jax.experimental.pallas import tpu as pltpu


def _cdiv(a, b):
    return -(-a // b)


def _round_up(a, b):
    return _cdiv(a, b) * b


# ---------------------------------------------------------------------------
# Kernels
# ---------------------------------------------------------------------------
def _conv_stats_kernel(x_ref, w_ref, sum_ref, sq_ref):
    """Pass 1: conv matmul for one (batch, L-tile) block -> BN partial sums only.

    x_ref:   (1, KC, tile_l)  bf16  im2col taps, lanes = L_out positions
    w_ref:   (C_out, KC)      bf16  folded conv weight
    sum_ref: (1, 1, C_out, 1) f32   per-tile sum over lanes
    sq_ref:  (1, 1, C_out, 1) f32   per-tile sum of squares over lanes
    """
    z = jnp.dot(w_ref[...], x_ref[0], preferred_element_type=jnp.float32)
    sum_ref[...] = jnp.sum(z, axis=1, keepdims=True)[None, None]
    sq_ref[...] = jnp.sum(z * z, axis=1, keepdims=True)[None, None]


def _conv_bn_relu_kernel(x_ref, w_ref, scale_ref, shift_ref, o_ref):
    """Pass 2: recompute conv, y = relu(z*scale + shift); lane-dense direct-layout store.

    x_ref:     (1, KC, tile_l)     bf16
    w_ref:     (C_out, KC)         bf16
    scale_ref: (C_out, 1)          f32
    shift_ref: (C_out, 1)          f32
    o_ref:     (1, C_out, tile_l)  output tile of the (N, C_out, L_out_pad) array
    """
    z = jnp.dot(w_ref[...], x_ref[0], preferred_element_type=jnp.float32)
    y = jnp.maximum(z * scale_ref[...] + shift_ref[...], 0.0)
    o_ref[...] = y[None].astype(o_ref.dtype)


# ---------------------------------------------------------------------------
# Wrapper
# ---------------------------------------------------------------------------
def _pick_tile_l(l_out, n, kc, c_out, *, vmem_budget_bytes=16 * 1024 * 1024,
                 cap=65536):
    """Largest multiple-of-128 L tile whose double-buffered pass-2 working set
    (bf16 x block + f32 out block + f32 in-kernel temporaries) fits a budget
    that is safe on all generations (v7x scoped default is 32 MiB)."""
    per_col = 2 * (kc * 2 + c_out * 4) + 3 * c_out * 4
    t = (vmem_budget_bytes // per_col) // 128 * 128
    t = max(128, min(t, cap))
    l_up = _round_up(l_out, 128)
    t = min(t, l_up)
    if n == 1 and l_up >= 256:
        # v7x has two TensorCores; keep >= 2 grid steps so "parallel" can shard
        # them (v5e/v6e have one TC, so this only costs a little padding).
        t = min(t, _round_up(_cdiv(l_out, 2), 128))
    return t


def block_reference(x, w, b, gamma, beta, *, stride, eps=1e-5):
    """Plain-JAX reference matching PyTorch Conv1d + BatchNorm1d(train) + ReLU."""
    k_size = w.shape[-1]
    pad = (k_size - 1) // 2
    conv = lax.conv_general_dilated(
        x, w, window_strides=(stride,), padding=[(pad, pad)],
        dimension_numbers=("NCH", "OIH", "NCH"),
    ) + b[None, :, None]
    mean = jnp.mean(conv, axis=(0, 2), keepdims=True)
    var = jnp.mean((conv - mean) ** 2, axis=(0, 2), keepdims=True)
    y = (conv - mean) * lax.rsqrt(var + eps)
    y = y * gamma[None, :, None] + beta[None, :, None]
    return jnp.maximum(y, 0.0)


@functools.partial(jax.jit,
                   static_argnames=("stride", "eps", "max_tile_l", "min_m_for_pallas"))
def block_forward(x, w, b, gamma, beta, *, stride, eps=1e-5,
                  max_tile_l=65536, min_m_for_pallas=0):
    """x: (N, C_in, L) f32, w: (C_out, C_in, K), b/gamma/beta: (C_out,).

    `min_m_for_pallas` routes tiny problems (N*L_out below it) to plain XLA
    where two kernel launches are pure fixed overhead (set ~16384 in prod);
    default 0 keeps the Pallas path so this script always exercises the kernels.
    """
    n, c_in, length = x.shape
    c_out, _, k_size = w.shape
    assert k_size % 2 == 1, "padding=(K-1)//2 matches PyTorch 'same' only for odd K"
    assert max_tile_l % 128 == 0 and max_tile_l >= 128
    pad = (k_size - 1) // 2
    l_out = (length + 2 * pad - k_size) // stride + 1
    m = n * l_out
    kc = k_size * c_in

    if m < min_m_for_pallas:
        return block_reference(x, w, b, gamma, beta, stride=stride, eps=eps).astype(x.dtype)

    # --- glue: per-batch channels-second im2col (K folded into contraction) ---
    # TODO(synk): forming the K taps in-kernel (strided pl.ds on a padded-input
    # block) would remove this K-fold HBM replication of the input.
    x_pad = jnp.pad(x, ((0, 0), (0, 0), (pad, pad)))                   # (N, C_in, L+2p)
    taps = [x_pad[:, :, k:k + (l_out - 1) * stride + 1:stride] for k in range(k_size)]
    x_taps = jnp.stack(taps, axis=1).reshape(n, kc, l_out)             # (N, KC, L_out)

    tile_l = min(_pick_tile_l(l_out, n, kc, c_out), max_tile_l)
    nt_l = _cdiv(l_out, tile_l)
    l_out_pad = nt_l * tile_l
    x_taps = jnp.pad(x_taps, ((0, 0), (0, 0), (0, l_out_pad - l_out))).astype(jnp.bfloat16)
    w_cf = jnp.transpose(w, (0, 2, 1)).reshape(c_out, kc).astype(jnp.bfloat16)

    cparams = pltpu.CompilerParams(
        dimension_semantics=("parallel", "parallel"),
        vmem_limit_bytes=32 * 1024 * 1024,
    )

    # --- pass 1: per-tile BN partial sums (z is never materialized in HBM) ---
    sums, sqs = pl.pallas_call(
        _conv_stats_kernel,
        out_shape=(
            jax.ShapeDtypeStruct((n, nt_l, c_out, 1), jnp.float32),
            jax.ShapeDtypeStruct((n, nt_l, c_out, 1), jnp.float32),
        ),
        grid_spec=pltpu.PrefetchScalarGridSpec(
            num_scalar_prefetch=0,
            grid=(n, nt_l),
            in_specs=[
                pl.BlockSpec((1, kc, tile_l), lambda i, j: (i, 0, j)),
                pl.BlockSpec((c_out, kc), lambda i, j: (0, 0)),
            ],
            out_specs=(
                pl.BlockSpec((1, 1, c_out, 1), lambda i, j: (i, j, 0, 0)),
                pl.BlockSpec((1, 1, c_out, 1), lambda i, j: (i, j, 0, 0)),
            ),
        ),
        compiler_params=cparams,
    )(x_taps, w_cf)

    # --- global BN statistics (train mode: biased variance over N*L_out) ---
    # The conv bias is a per-channel constant removed exactly by the mean
    # subtraction of training-mode BN, so it is never applied (re-add it if
    # this is ever reused with eval-mode running statistics).  Padded lanes
    # are zeros and contribute exactly 0 to both partials.
    # NOTE: E[z^2]-E[z]^2 in f32 can cancel for data with very large means;
    # acceptable at bf16 operand precision for activation-scale inputs.
    tot_s = jnp.sum(sums, axis=(0, 1))[:, 0]                           # (C_out,)
    tot_q = jnp.sum(sqs, axis=(0, 1))[:, 0]
    mean = tot_s / m
    var = jnp.maximum(tot_q / m - mean * mean, 0.0)
    scale = (gamma * lax.rsqrt(var + eps)).astype(jnp.float32)
    shift = (beta - mean * scale).astype(jnp.float32)

    # --- pass 2: recompute conv, BN affine + ReLU, write (N, C_out, L) directly ---
    out = pl.pallas_call(
        _conv_bn_relu_kernel,
        out_shape=jax.ShapeDtypeStruct((n, c_out, l_out_pad), x.dtype),
        grid_spec=pltpu.PrefetchScalarGridSpec(
            num_scalar_prefetch=0,
            grid=(n, nt_l),
            in_specs=[
                pl.BlockSpec((1, kc, tile_l), lambda i, j: (i, 0, j)),
                pl.BlockSpec((c_out, kc), lambda i, j: (0, 0)),
                pl.BlockSpec((c_out, 1), lambda i, j: (0, 0)),
                pl.BlockSpec((c_out, 1), lambda i, j: (0, 0)),
            ],
            out_specs=pl.BlockSpec((1, c_out, tile_l), lambda i, j: (i, 0, j)),
        ),
        compiler_params=cparams,
    )(x_taps, w_cf, scale.reshape(c_out, 1), shift.reshape(c_out, 1))

    return out[:, :, :l_out]


# ---------------------------------------------------------------------------
# Demo / correctness check
# ---------------------------------------------------------------------------
if __name__ == "__main__":
    def make_inputs(key, n, c_in, length, c_out, k_size):
        kx, kw, kb = jax.random.split(key, 3)
        x = jax.random.normal(kx, (n, c_in, length), dtype=jnp.float32)
        # Conv1d weight: kaiming_normal_, mode='fan_out', relu (fan_out = C_out*K)
        std = (2.0 / (c_out * k_size)) ** 0.5
        w = std * jax.random.normal(kw, (c_out, c_in, k_size), dtype=jnp.float32)
        # Conv1d bias: PyTorch default U(-1/sqrt(fan_in), 1/sqrt(fan_in))
        bound = 1.0 / (c_in * k_size) ** 0.5
        b = jax.random.uniform(kb, (c_out,), minval=-bound, maxval=bound,
                               dtype=jnp.float32)
        gamma = jnp.ones((c_out,), jnp.float32)   # BatchNorm1d weight = 1
        beta = jnp.zeros((c_out,), jnp.float32)   # BatchNorm1d bias = 0
        return x, w, b, gamma, beta

    def check(key, *, n, c_in, length, c_out, k_size, stride, max_tile_l=65536):
        x, w, b, gamma, beta = make_inputs(key, n, c_in, length, c_out, k_size)
        out = block_forward(x, w, b, gamma, beta, stride=stride,
                            max_tile_l=max_tile_l)
        out = jax.block_until_ready(out)

        # Tight check of the kernel's math: reference with the same bf16
        # operand quantization as the MXU inputs.
        x_q = x.astype(jnp.bfloat16).astype(jnp.float32)
        w_q = w.astype(jnp.bfloat16).astype(jnp.float32)
        ref_q = block_reference(x_q, w_q, b, gamma, beta, stride=stride)
        assert out.shape == ref_q.shape, (out.shape, ref_q.shape)
        assert jnp.allclose(out, ref_q, rtol=1e-3, atol=1e-3), float(
            jnp.max(jnp.abs(out - ref_q)))

        # Full-f32 module semantics; tolerance set by the bf16 MXU operands.
        ref = block_reference(x, w, b, gamma, beta, stride=stride)
        assert jnp.allclose(out, ref, rtol=3e-2, atol=3e-2), float(
            jnp.max(jnp.abs(out - ref)))

    key = jax.random.PRNGKey(0)
    k1, k2 = jax.random.split(key)
    # Module config: Block(in_channel=4, out_channel=8, stride=2, kernel_size=3)
    check(k1, n=2, c_in=4, length=16, c_out=8, k_size=3, stride=2)
    # stride=1, L_out > tile_l (forces multiple L tiles) to exercise the index maps.
    check(k2, n=3, c_in=4, length=300, c_out=8, k_size=3, stride=1, max_tile_l=128)

    print("KERNEL_OK")
</pallas_src>

<mosaic_0001>
module attributes {stable_mosaic.version = 11 : i64} {
  func.func @_conv_stats_kernel(%arg0: i32, %arg1: i32, %arg2: memref<1x12x128xbf16, #tpu.memory_space<vmem>>, %arg3: memref<8x12xbf16, #tpu.memory_space<vmem>>, %arg4: memref<1x1x8x1xf32, #tpu.memory_space<vmem>>, %arg5: memref<1x1x8x1xf32, #tpu.memory_space<vmem>>) attributes {dimension_semantics = [#tpu.dimension_semantics<parallel>, #tpu.dimension_semantics<parallel>], iteration_bounds = array<i64: 2, 1>, scalar_prefetch = 0 : i64, scratch_operands = 0 : i64, tpu.core_type = #tpu.core_type<tc>, window_params = [{transform_indices = @transform_0, window_bounds = array<i64: 1, 12, 128>}, {pipeline_mode = #tpu.pipeline_mode<synchronous>, transform_indices = @transform_1, window_bounds = array<i64: 8, 12>}, {transform_indices = @transform_2, window_bounds = array<i64: 1, 1, 8, 1>}, {transform_indices = @transform_3, window_bounds = array<i64: 1, 1, 8, 1>}]} {
    %c0 = arith.constant 0 : index
    %c0_0 = arith.constant 0 : index
    %0 = vector.load %arg3[%c0, %c0_0] : memref<8x12xbf16, #tpu.memory_space<vmem>>, vector<8x12xbf16>
    %c0_1 = arith.constant 0 : index
    %c0_2 = arith.constant 0 : index
    %c0_3 = arith.constant 0 : index
    %1 = vector.load %arg2[%c0_1, %c0_2, %c0_3] : memref<1x12x128xbf16, #tpu.memory_space<vmem>>, vector<1x12x128xbf16>
    %2 = vector.shape_cast %1 : vector<1x12x128xbf16> to vector<12x128xbf16>
    %cst = arith.constant dense<0.000000e+00> : vector<8x128xf32>
    %3 = tpu.matmul %0, %2, %cst {dimension_numbers = #tpu.dot_dimension_numbers<[1], [0], [0], [1], [0, 0, 1, 1], [], []>} : vector<8x12xbf16>, vector<12x128xbf16>, vector<8x128xf32> -> vector<8x128xf32>
    %cst_4 = arith.constant dense<0.000000e+00> : vector<8xf32>
    %4 = vector.multi_reduction <add>, %3, %cst_4 [1] : vector<8x128xf32> to vector<8xf32>
    %5 = vector.shape_cast %4 : vector<8xf32> to vector<8x1xf32>
    %6 = vector.shape_cast %5 : vector<8x1xf32> to vector<1x1x8x1xf32>
    %c0_5 = arith.constant 0 : index
    %c0_6 = arith.constant 0 : index
    %c0_7 = arith.constant 0 : index
    %c0_8 = arith.constant 0 : index
    %7 = vector.load %arg4[%c0_5, %c0_6, %c0_7, %c0_8] : memref<1x1x8x1xf32, #tpu.memory_space<vmem>>, vector<1x1x8x1xf32>
    tpu.vector_store %arg4[%c0_5, %c0_6, %c0_7, %c0_8], %6 {strides = array<i32>} : memref<1x1x8x1xf32, #tpu.memory_space<vmem>>, vector<1x1x8x1xf32>,
    %8 = arith.mulf %3, %3 : vector<8x128xf32>
    %cst_9 = arith.constant dense<0.000000e+00> : vector<8xf32>
    %9 = vector.multi_reduction <add>, %8, %cst_9 [1] : vector<8x128xf32> to vector<8xf32>
    %10 = vector.shape_cast %9 : vector<8xf32> to vector<8x1xf32>
    %11 = vector.shape_cast %10 : vector<8x1xf32> to vector<1x1x8x1xf32>
    %c0_10 = arith.constant 0 : index
    %c0_11 = arith.constant 0 : index
    %c0_12 = arith.constant 0 : index
    %c0_13 = arith.constant 0 : index
    %12 = vector.load %arg5[%c0_10, %c0_11, %c0_12, %c0_13] : memref<1x1x8x1xf32, #tpu.memory_space<vmem>>, vector<1x1x8x1xf32>
    tpu.vector_store %arg5[%c0_10, %c0_11, %c0_12, %c0_13], %11 {strides = array<i32>} : memref<1x1x8x1xf32, #tpu.memory_space<vmem>>, vector<1x1x8x1xf32>,
    return
  }
  func.func @transform_0(%arg0: i32, %arg1: i32) -> (i32, i32, i32) {
    %c0_i32 = arith.constant 0 : i32
    %c0_i32_0 = arith.constant 0 : i32
    return %arg0, %c0_i32, %arg1 : i32, i32, i32
  }
  func.func @transform_1(%arg0: i32, %arg1: i32) -> (i32, i32) {
    %c0_i32 = arith.constant 0 : i32
    %c0_i32_0 = arith.constant 0 : i32
    %c0_i32_1 = arith.constant 0 : i32
    return %c0_i32, %c0_i32_0 : i32, i32
  }
  func.func @transform_2(%arg0: i32, %arg1: i32) -> (i32, i32, i32, i32) {
    %c0_i32 = arith.constant 0 : i32
    %c0_i32_0 = arith.constant 0 : i32
    %c0_i32_1 = arith.constant 0 : i32
    return %arg0, %arg1, %c0_i32, %c0_i32_0 : i32, i32, i32, i32
  }
  func.func @transform_3(%arg0: i32, %arg1: i32) -> (i32, i32, i32, i32) {
    %c0_i32 = arith.constant 0 : i32
    %c0_i32_0 = arith.constant 0 : i32
    %c0_i32_1 = arith.constant 0 : i32
    return %arg0, %arg1, %c0_i32, %c0_i32_0 : i32, i32, i32, i32
  }
}

module attributes {stable_mosaic.version = 11 : i64} {
  func.func @_conv_bn_relu_kernel(%arg0: i32, %arg1: i32, %arg2: memref<1x12x128xbf16, #tpu.memory_space<vmem>>, %arg3: memref<8x12xbf16, #tpu.memory_space<vmem>>, %arg4: memref<8x1xf32, #tpu.memory_space<vmem>>, %arg5: memref<8x1xf32, #tpu.memory_space<vmem>>, %arg6: memref<1x8x128xf32, #tpu.memory_space<vmem>>) attributes {dimension_semantics = [#tpu.dimension_semantics<parallel>, #tpu.dimension_semantics<parallel>], iteration_bounds = array<i64: 2, 1>, scalar_prefetch = 0 : i64, scratch_operands = 0 : i64, tpu.core_type = #tpu.core_type<tc>, window_params = [{transform_indices = @transform_0, window_bounds = array<i64: 1, 12, 128>}, {pipeline_mode = #tpu.pipeline_mode<synchronous>, transform_indices = @transform_1, window_bounds = array<i64: 8, 12>}, {pipeline_mode = #tpu.pipeline_mode<synchronous>, transform_indices = @transform_2, window_bounds = array<i64: 8, 1>}, {pipeline_mode = #tpu.pipeline_mode<synchronous>, transform_indices = @transform_3, window_bounds = array<i64: 8, 1>}, {transform_indices = @transform_4, window_bounds = array<i64: 1, 8, 128>}]} {
    %c0 = arith.constant 0 : index
    %c0_0 = arith.constant 0 : index
    %0 = vector.load %arg3[%c0, %c0_0] : memref<8x12xbf16, #tpu.memory_space<vmem>>, vector<8x12xbf16>
    %c0_1 = arith.constant 0 : index
    %c0_2 = arith.constant 0 : index
    %c0_3 = arith.constant 0 : index
    %1 = vector.load %arg2[%c0_1, %c0_2, %c0_3] : memref<1x12x128xbf16, #tpu.memory_space<vmem>>, vector<1x12x128xbf16>
    %2 = vector.shape_cast %1 : vector<1x12x128xbf16> to vector<12x128xbf16>
    %cst = arith.constant dense<0.000000e+00> : vector<8x128xf32>
    %3 = tpu.matmul %0, %2, %cst {dimension_numbers = #tpu.dot_dimension_numbers<[1], [0], [0], [1], [0, 0, 1, 1], [], []>} : vector<8x12xbf16>, vector<12x128xbf16>, vector<8x128xf32> -> vector<8x128xf32>
    %c0_4 = arith.constant 0 : index
    %c0_5 = arith.constant 0 : index
    %4 = vector.load %arg4[%c0_4, %c0_5] : memref<8x1xf32, #tpu.memory_space<vmem>>, vector<8x1xf32>
    %5 = vector.broadcast %4 : vector<8x1xf32> to vector<8x128xf32>
    %6 = arith.mulf %3, %5 : vector<8x128xf32>
    %c0_6 = arith.constant 0 : index
    %c0_7 = arith.constant 0 : index
    %7 = vector.load %arg5[%c0_6, %c0_7] : memref<8x1xf32, #tpu.memory_space<vmem>>, vector<8x1xf32>
    %8 = vector.broadcast %7 : vector<8x1xf32> to vector<8x128xf32>
    %9 = arith.addf %6, %8 : vector<8x128xf32>
    %cst_8 = arith.constant 0.000000e+00 : f32
    %10 = vector.broadcast %cst_8 : f32 to vector<8x128xf32>
    %11 = arith.maximumf %9, %10 : vector<8x128xf32>
    %12 = vector.shape_cast %11 : vector<8x128xf32> to vector<1x8x128xf32>
    %c0_9 = arith.constant 0 : index
    %c0_10 = arith.constant 0 : index
    %c0_11 = arith.constant 0 : index
    %13 = vector.load %arg6[%c0_9, %c0_10, %c0_11] : memref<1x8x128xf32, #tpu.memory_space<vmem>>, vector<1x8x128xf32>
    tpu.vector_store %arg6[%c0_9, %c0_10, %c0_11], %12 {strides = array<i32>} : memref<1x8x128xf32, #tpu.memory_space<vmem>>, vector<1x8x128xf32>,
    return
  }
  func.func @transform_0(%arg0: i32, %arg1: i32) -> (i32, i32, i32) {
    %c0_i32 = arith.constant 0 : i32
    %c0_i32_0 = arith.constant 0 : i32
    return %arg0, %c0_i32, %arg1 : i32, i32, i32
  }
  func.func @transform_1(%arg0: i32, %arg1: i32) -> (i32, i32) {
    %c0_i32 = arith.constant 0 : i32
    %c0_i32_0 = arith.constant 0 : i32
    %c0_i32_1 = arith.constant 0 : i32
    return %c0_i32, %c0_i32_0 : i32, i32
  }
  func.func @transform_2(%arg0: i32, %arg1: i32) -> (i32, i32) {
    %c0_i32 = arith.constant 0 : i32
    %c0_i32_0 = arith.constant 0 : i32
    %c0_i32_1 = arith.constant 0 : i32
    return %c0_i32, %c0_i32_0 : i32, i32
  }
  func.func @transform_3(%arg0: i32, %arg1: i32) -> (i32, i32) {
    %c0_i32 = arith.constant 0 : i32
    %c0_i32_0 = arith.constant 0 : i32
    %c0_i32_1 = arith.constant 0 : i32
    return %c0_i32, %c0_i32_0 : i32, i32
  }
  func.func @transform_4(%arg0: i32, %arg1: i32) -> (i32, i32, i32) {
    %c0_i32 = arith.constant 0 : i32
    %c0_i32_0 = arith.constant 0 : i32
    return %arg0, %c0_i32, %arg1 : i32, i32, i32
  }
}

</mosaic_0001>

<llo_original>
// kernel: block_forward.3
$region0: #{block_forward.3}
  #allocation0 [shape = 'u32[]', space=smem, size = 0x4, offset = 0x4, fixed_abs, tag = 'smem constant byte address 0x4 - core index']
  #allocation1 [shape = 'u32[144,128]{1,0:T(1,128)}', space=vmem, size = 0x12000, scoped, tag = 'internal scratch']
  %s0 = inlined_call_operand.vmem [shape: bf16[2,12,128], index: 0, kind: input, shape index: {}]
  %s1 = inlined_call_operand.vmem [shape: bf16[8,12], index: 1, kind: input, shape index: {}]
  %s2 = inlined_call_operand.vmem [shape: f32[8,1], index: 2, kind: input, shape index: {}]
  %s3 = inlined_call_operand.vmem [shape: f32[8,1], index: 3, kind: input, shape index: {}]
  %s4 = inlined_call_operand.hbm [shape: f32[2,8,128], index: 4, kind: output, shape index: {}]
  %s5 = sld [smem:[#allocation0]]
  $region49: #{block_forward.3} parent=0
    _
  %s7 = ssub.s32 1, %s5
  %s8 = scalar_select 0, %s7, %s5
  $region1: #{block_forward.3} parent=0
    #allocation2 [shape = 'u8[8192]{0}', space=vmem, size = 0x2000, scoped, tag = 'output window, operand 0']
    #allocation3 [shape = 's32[2]{0}', space=sflag, size = 0x8, scoped, tag = 'scoped memory for block_forward.3']
    %9 = vsyncpa [#allocation3], 0
    %s10 = scalar_lea.sflag [#allocation3], 1
    %11 = vsyncpa %s10, 0
    loop: start=0, step=1, limit=4
    $region2: #{block_forward.3} parent=1 // loop_pre_header
      _
    $region3: #{block_forward.3} parent=1 // loop_header
      %s13 = sphi 0, %s17
      %p14 = scmp.ge.s32.totalorder %s13, 4
      %s20 = sphi 0, %s32
      %s21 = sphi 0, %s28
      %s22 = sphi 0, %s20
      %s23 = sphi 0, %s21
      %s24 = sphi 0, %s22
      %s25 = sphi 0, %s23
      %s37 = sphi 0, %s39
      %s40 = sphi 0, %s37
      %s41 = sphi 0, %s40
      %s57 = sphi 0, %s41
      %s61 = sphi 0, %s61
      %s63 = sphi 0, %s61
      %s64 = sphi 0, %s63
      %s78 = sphi 0, %s64
      %s82 = sphi 0, %s82
      %s84 = sphi 0, %s82
      %s85 = sphi 0, %s84
      %s99 = sphi 0, %s85
      %s103 = sphi 0, %s103
      %s105 = sphi 0, %s103
      %s106 = sphi 0, %s105
      %s120 = sphi 0, %s106
      %s128 = sphi 0, %s130
      %s131 = sphi 0, %s128
      %s132 = sphi 0, %s131
      %s148 = sphi 0, %s132
    $region4: #{block_forward.3} parent=1 // loop_header_branch
      %16 = sbr.rel (%p14) target = $region8
    $region5: #{block_forward.3} parent=1 // loop_body
      %s18 = ssub.s32 %s13, 1
      %s19 = ssub.s32 %s13, 2
      %s26 = sadd.s32 1, %s21
      %p27 = scmp.ge.s32.totalorder %s26, 1
      %s28 = scalar_select %p27, 0, %s26
      %s29 = sadd.s32 1, %s20
      %s30 = scalar_select %p27, %s29, %s20
      %p31 = scmp.ge.s32.totalorder %s30, 2
      %s32 = scalar_select %p31, 0, %s30
      %s33 = ssub.s32 %s20, %s32
      %s34 = ssub.s32 %s21, %s28
      %s35 = sor.u32 %s33, %s34
      %p36 = scmp.eq.s32.totalorder %s35, 0
      %s38 = sadd.s32 %s37, 1
      %s39 = scalar_select %p36, %s37, %s38
      %p42 = pneg %p36
      %p43 = scmp.eq.s32.totalorder %s13, 1
      %p44 = por %p42, %p43
      %p45 = scmp.ne.s32.totalorder %s37, %s40
      %p46 = scmp.eq.s32.totalorder %s13, 0
      %p47 = por %p45, %p46
      %p48 = scmp.ne.s32.totalorder %s37, %s40
      %p49 = scmp.eq.s32.totalorder %s18, 1
      %p50 = por %p48, %p49
      %p51 = scmp.ne.s32.totalorder %s40, %s41
      %p52 = scmp.eq.s32.totalorder %s18, 0
      %p53 = por %p51, %p52
      %p54 = scmp.ne.s32.totalorder %s40, %s41
      %p55 = scmp.eq.s32.totalorder %s19, 1
      %p56 = por %p54, %p55
      %p58 = scmp.ne.s32.totalorder %s41, %s57
      %p59 = scmp.eq.s32.totalorder %s19, 0
      %p60 = por %p58, %p59
      %s62 = sadd.s32 %s61, 1
      %p65 = scmp.eq.s32.totalorder %s13, 1
      %p66 = scmp.ne.s32.totalorder %s61, %s63
      %p67 = scmp.eq.s32.totalorder %s13, 0
      %p68 = por %p66, %p67
      %p69 = scmp.ne.s32.totalorder %s61, %s63
      %p70 = scmp.eq.s32.totalorder %s18, 1
      %p71 = por %p69, %p70
      %p72 = scmp.ne.s32.totalorder %s63, %s64
      %p73 = scmp.eq.s32.totalorder %s18, 0
      %p74 = por %p72, %p73
      %p75 = scmp.ne.s32.totalorder %s63, %s64
      %p76 = scmp.eq.s32.totalorder %s19, 1
      %p77 = por %p75, %p76
      %p79 = scmp.ne.s32.totalorder %s64, %s78
      %p80 = scmp.eq.s32.totalorder %s19, 0
      %p81 = por %p79, %p80
      %s83 = sadd.s32 %s82, 1
      %p86 = scmp.eq.s32.totalorder %s13, 1
      %p87 = scmp.ne.s32.totalorder %s82, %s84
      %p88 = scmp.eq.s32.totalorder %s13, 0
      %p89 = por %p87, %p88
      %p90 = scmp.ne.s32.totalorder %s82, %s84
      %p91 = scmp.eq.s32.totalorder %s18, 1
      %p92 = por %p90, %p91
      %p93 = scmp.ne.s32.totalorder %s84, %s85
      %p94 = scmp.eq.s32.totalorder %s18, 0
      %p95 = por %p93, %p94
      %p96 = scmp.ne.s32.totalorder %s84, %s85
      %p97 = scmp.eq.s32.totalorder %s19, 1
      %p98 = por %p96, %p97
      %p100 = scmp.ne.s32.totalorder %s85, %s99
      %p101 = scmp.eq.s32.totalorder %s19, 0
      %p102 = por %p100, %p101
      %s104 = sadd.s32 %s103, 1
      %p107 = scmp.eq.s32.totalorder %s13, 1
      %p108 = scmp.ne.s32.totalorder %s103, %s105
      %p109 = scmp.eq.s32.totalorder %s13, 0
      %p110 = por %p108, %p109
      %p111 = scmp.ne.s32.totalorder %s103, %s105
      %p112 = scmp.eq.s32.totalorder %s18, 1
      %p113 = por %p111, %p112
      %p114 = scmp.ne.s32.totalorder %s105, %s106
      %p115 = scmp.eq.s32.totalorder %s18, 0
      %p116 = por %p114, %p115
      %p117 = scmp.ne.s32.totalorder %s105, %s106
      %p118 = scmp.eq.s32.totalorder %s19, 1
      %p119 = por %p117, %p118
      %p121 = scmp.ne.s32.totalorder %s106, %s120
      %p122 = scmp.eq.s32.totalorder %s19, 0
      %p123 = por %p121, %p122
      %s124 = ssub.s32 %s20, %s32
      %s125 = ssub.s32 %s21, %s28
      %s126 = sor.u32 %s124, %s125
      %p127 = scmp.eq.s32.totalorder %s126, 0
      %s129 = sadd.s32 %s128, 1
      %s130 = scalar_select %p127, %s128, %s129
      %p133 = pneg %p127
      %p134 = scmp.eq.s32.totalorder %s13, 1
      %p135 = por %p133, %p134
      %p136 = scmp.ne.s32.totalorder %s128, %s131
      %p137 = scmp.eq.s32.totalorder %s13, 0
      %p138 = por %p136, %p137
      %p139 = scmp.ne.s32.totalorder %s128, %s131
      %p140 = scmp.eq.s32.totalorder %s18, 1
      %p141 = por %p139, %p140
      %p142 = scmp.ne.s32.totalorder %s131, %s132
      %p143 = scmp.eq.s32.totalorder %s18, 0
      %p144 = por %p142, %p143
      %p145 = scmp.ne.s32.totalorder %s131, %s132
      %p146 = scmp.eq.s32.totalorder %s19, 1
      %p147 = por %p145, %p146
      %p149 = scmp.ne.s32.totalorder %s132, %s148
      %p150 = scmp.eq.s32.totalorder %s19, 0
      %p151 = por %p149, %p150
      %p152 = scmp.le.s32.totalorder 1, %s13
      %p153 = scmp.lt.s32.totalorder %s13, 3
      %p154 = pnand %p152, %p153
      %p155 = pneg %p154
      // Predicated region
      $region9: #{block_forward.3} parent=5 // pred_check
        _
      $region10: #{block_forward.3} parent=5 // pred_check_branch
        %157 = sbr.rel (%p154) target = $region12
      $region11: #{block_forward.3} parent=5 // pred_region
        %s158 = ssub.s32 %s13, 1
        // Predicated region
        $region13: #{block_forward.3} parent=11 // pred_check
          %p159 = pneg %p74
        $region14: #{block_forward.3} parent=11 // pred_check_branch
          %161 = sbr.rel (%p159) target = $region16
        $region15: #{block_forward.3} parent=11 // pred_region
          _
        $region16: #{block_forward.3} parent=11 // pred_fallthru
          _
        // Predicated region
        $region17: #{block_forward.3} parent=11 // pred_check
          %p162 = pneg %p95
        $region18: #{block_forward.3} parent=11 // pred_check_branch
          %164 = sbr.rel (%p162) target = $region20
        $region19: #{block_forward.3} parent=11 // pred_region
          _
        $region20: #{block_forward.3} parent=11 // pred_fallthru
          _
        // Predicated region
        $region21: #{block_forward.3} parent=11 // pred_check
          %p165 = pneg %p116
        $region22: #{block_forward.3} parent=11 // pred_check_branch
          %167 = sbr.rel (%p165) target = $region24
        $region23: #{block_forward.3} parent=11 // pred_region
          _
        $region24: #{block_forward.3} parent=11 // pred_fallthru
          _
      $region12: #{block_forward.3} parent=5 // pred_fallthru
        _
      %p168 = scmp.lt.s32.totalorder %s13, 2
      // Predicated region
      $region25: #{block_forward.3} parent=5 // pred_check
        %p169 = pneg %p168
      $region26: #{block_forward.3} parent=5 // pred_check_branch
        %171 = sbr.rel (%p169) target = $region28
      $region27: #{block_forward.3} parent=5 // pred_region
        // Predicated region
        $region29: #{block_forward.3} parent=27 // pred_check
          %p172 = pneg %p47
        $region30: #{block_forward.3} parent=27 // pred_check_branch
          %174 = sbr.rel (%p172) target = $region32
        $region31: #{block_forward.3} parent=27 // pred_region
          %p175 = scmp.lt.s32.totalorder %s20, 1
          %s176 = scalar_select %p175, %s20, 1
          %p177 = scmp.lt.s32.totalorder %s21, 0
          %s178 = scalar_select %p177, %s21, 0
          %s179 = smul.addr %s176, 2
          %s180 = sadd.s32 %s178, %s179
          %s181 = smul.addr %s180, 4
          %s182 = scalar_lea.vmem %s0, %s181
        $region32: #{block_forward.3} parent=27 // pred_fallthru
          _
      $region28: #{block_forward.3} parent=5 // pred_fallthru
        _
      %p183 = scmp.le.s32.totalorder 1, %s13
      %p184 = scmp.lt.s32.totalorder %s13, 3
      %p185 = pnand %p183, %p184
      %p186 = pneg %p185
      // Predicated region
      $region33: #{block_forward.3} parent=5 // pred_check
        _
      $region34: #{block_forward.3} parent=5 // pred_check_branch
        %188 = sbr.rel (%p185) target = $region36
      $region35: #{block_forward.3} parent=5 // pred_region
        %s189 = ssub.s32 %s13, 1
        %p190 = scmp.lt.s32.totalorder %s22, 1
        %s191 = scalar_select %p190, %s22, 1
        %p192 = scmp.lt.s32.totalorder %s23, 0
        %s193 = scalar_select %p192, %s23, 0
        %s194 = smul.addr %s191, 2
        %s195 = sadd.s32 %s193, %s194
        %s196 = smul.addr %s195, 4
        %s197 = scalar_lea.vmem %s0, %s196
        %p198 = pneg %p53
        %p199 = pneg %p50
        %p200 = pneg %p74
        %p201 = pneg %p71
        %p202 = pneg %p95
        %p203 = pneg %p92
        %p204 = pneg %p116
        %p205 = pneg %p113
        %p206 = pneg %p144
        %p207 = pneg %p141
        %s208 = sand.u32 %s131, 1
        %s209 = scalar_lea.sflag [#allocation3], %s208
        %s210 = sand.u32 %s131, 1
        %s211 = smul.addr %s210, 8
        %s212 = scalar_lea.vmem [#allocation2], %s211
        %p213 = scmp.lt.s32.totalorder %s22, 1
        %s214 = scalar_select %p213, %s22, 1
        %p215 = scmp.lt.s32.totalorder %s23, 0
        %s216 = scalar_select %p215, %s23, 0
        %s217 = smul.addr %s214, 2
        %s218 = sadd.s32 %s216, %s217
        %s219 = smul.addr %s218, 4
        %s220 = scalar_lea.vmem %s0, %s219
        %v222 = vld [vmem:[%s1] sm:$0xf]
        %v223 = vld [vmem:[%s220] sm:$0xf]
        %v224 = vld [vmem:[%s220 + $0x4] sm:$0x3]
        %v227 = vunpack.c.l.b16 %v223
        %v228 = vunpack.c.l.b16 %v224
        %v229 = vpack.c.b16 %v228, %v227
        %vm230 = vcmask 97280
        %v232 = vsel %vm230, %v222, 0
        %vm234 = vcmask 1045504
        %v236 = vsel %vm234, %v229, 0
        %238 = vmatprep.subr.bf16.mxu0 0
        %239 = vmatpush1.bf16.msra.mxu0 %v236
        %240 = vmatprep.subr.bf16.mxu0 0
        %241 = vmatpush1.bf16.msra.mxu0 0
        %242 = vmatprep.subr.bf16.mxu0 0
        %243 = vmatpush1.bf16.msra.mxu0 0
        %244 = vmatprep.subr.bf16.mxu0 0
        %245 = vmatpush1.bf16.msra.mxu0 0
        %246 = vmatprep.subr.bf16.mxu0 0
        %247 = vmatpush1.bf16.msra.mxu0 0
        %248 = vmatprep.subr.bf16.mxu0 0
        %249 = vmatpush1.bf16.msra.mxu0 0
        %250 = vmatprep.subr.bf16.mxu0 0
        %251 = vmatpush1.bf16.msra.mxu0 0
        %252 = vmatprep.subr.bf16.mxu0 0
        %253 = vmatpush1.bf16.msra.mxu0 0
        %254 = vmatprep.subr.bf16.mxu0 0
        %255 = vmatpush1.bf16.msra.mxu0 0
        %256 = vmatprep.subr.bf16.mxu0 0
        %257 = vmatpush1.bf16.msra.mxu0 0
        %258 = vmatprep.subr.bf16.mxu0 0
        %259 = vmatpush1.bf16.msra.mxu0 0
        %260 = vmatprep.subr.bf16.mxu0 0
        %261 = vmatpush1.bf16.msra.mxu0 0
        %262 = vmatprep.subr.bf16.mxu0 0
        %263 = vmatpush1.bf16.msra.mxu0 0
        %264 = vmatprep.subr.bf16.mxu0 0
        %265 = vmatpush1.bf16.msra.mxu0 0
        %266 = vmatprep.subr.bf16.mxu0 0
        %267 = vmatpush1.bf16.msra.mxu0 0
        %268 = vmatprep.subr.bf16.mxu0 0
        %269 = vmatpush1.bf16.msra.mxu0 0
        %270 = vmatprep.mubr.bf16.mxu0 0
        %271 = vmatmul.mubr.bf16.gmra.mrb[0].mxu0 %v232
        %v272 = vpop.f32.mrb[0].mxu0
        %v273 = vadd.f32 0.0, %v272
        %v274 = vpop.f32.mrb[0].mxu0
        %v275 = vpop.f32.mrb[0].mxu0
        %v276 = vpop.f32.mrb[0].mxu0
        %277 = vdwg.mxu0
        %v278 = vld [vmem:[%s2] sm:$0xff]
        %280 = vset.pattern.permute.xlu0 0
        %281 = vperm.xlu0 %280, %v278
        %v282 = vpop.permute.xlu0 %281
        %v284 = vmul.f32 %v273, %v282
        %v285 = vld [vmem:[%s3] sm:$0xff]
        %287 = vset.pattern.permute.xlu0 0
        %288 = vperm.xlu0 %287, %v285
        %v289 = vpop.permute.xlu0 %288
        %v291 = vadd.f32 %v284, %v289
        %v292 = vmax.f32 %v291, 0.0
        %293 = vst [vmem:[%s212] sm:$0xff] %v292
        %s294 = sand.u32 %s131, 1
        %s295 = scalar_lea.sflag [#allocation3], %s294
        %s296 = sand.u32 %s131, 1
        %s297 = smul.addr %s296, 8
        %s298 = scalar_lea.vmem [#allocation2], %s297
        // Predicated region
        $region37: #{block_forward.3} parent=35 // pred_check
          %p299 = pneg %p141
        $region38: #{block_forward.3} parent=35 // pred_check_branch
          %301 = sbr.rel (%p299) target = $region40
        $region39: #{block_forward.3} parent=35 // pred_region
          %s303 = ssub.s32 128, 128
          %304 = vsyncadd %s295, %s303
          %s305 = sadd.s32 %s23, %s22
          %s306 = smul.addr %s305, 128
          %s307 = scalar_lea.hbm %s4, %s306
          %s309 = sshll.u32 %s298, 4
          %s310 = int_to_ptr.vmem [resolvable:$true] %s309
          %312 = dma.vmem_to_hbm [thread:$0]  %s310, 128, %s307, %s295
        $region40: #{block_forward.3} parent=35 // pred_fallthru
          _
      $region36: #{block_forward.3} parent=5 // pred_fallthru
        _
      %p313 = scmp.le.s32.totalorder 2, %s13
      // Predicated region
      $region41: #{block_forward.3} parent=5 // pred_check
        %p314 = pneg %p313
      $region42: #{block_forward.3} parent=5 // pred_check_branch
        %316 = sbr.rel (%p314) target = $region44
      $region43: #{block_forward.3} parent=5 // pred_region
        %s317 = ssub.s32 %s13, 2
        // Predicated region
        $region45: #{block_forward.3} parent=43 // pred_check
          %p318 = pneg %p147
        $region46: #{block_forward.3} parent=43 // pred_check_branch
          %320 = sbr.rel (%p318) target = $region48
        $region47: #{block_forward.3} parent=43 // pred_region
          %s321 = sand.u32 %s132, 1
          %s322 = scalar_lea.sflag [#allocation3], %s321
          %s323 = sand.u32 %s132, 1
          %s324 = smul.addr %s323, 8
          %s325 = scalar_lea.vmem [#allocation2], %s324
          %326 = dma.done %s322, 128
        $region48: #{block_forward.3} parent=43 // pred_fallthru
          _
      $region44: #{block_forward.3} parent=5 // pred_fallthru
        _
    $region6: #{block_forward.3} parent=1 // loop_footer
      %s17 = sadd.s32 1, %s13
    $region7: #{block_forward.3} parent=1 // loop_footer_branch
      %12 = sbr.rel target = $region3
    $region8: #{block_forward.3} parent=1 // loop_exit
      _
    %327 = vsyncpa [#allocation3], 1
    %s328 = scalar_lea.sflag [#allocation3], 1
    %329 = vsyncpa %s328, 1

// kernel: block_forward.2
$region0: #{block_forward.2}
  #allocation0 [shape = 'u32[]', space=smem, size = 0x4, offset = 0x4, fixed_abs, tag = 'smem constant byte address 0x4 - core index']
  #allocation1 [shape = 'u32[144,128]{1,0:T(1,128)}', space=vmem, size = 0x12000, scoped, tag = 'internal scratch']
  %s0 = inlined_call_operand.vmem [shape: bf16[2,12,128], index: 0, kind: input, shape index: {}]
  %s1 = inlined_call_operand.vmem [shape: bf16[8,12], index: 1, kind: input, shape index: {}]
  %s2 = inlined_call_operand.vmem [shape: f32[2,1,8,1], index: 2, kind: output, shape index: {0}]
  %s3 = inlined_call_operand.vmem [shape: f32[2,1,8,1], index: 3, kind: output, shape index: {1}]
  %4 = xla_tuple %s2, %s3
  %s5 = sld [smem:[#allocation0]]
  $region49: #{block_forward.2} parent=0
    _
  %s7 = ssub.s32 1, %s5
  %s8 = scalar_select 0, %s7, %s5
  loop: start=0, step=1, limit=4
  $region2: #{block_forward.2} parent=0 // loop_pre_header
    _
  $region3: #{block_forward.2} parent=0 // loop_header
    %s10 = sphi 0, %s14
    %p11 = scmp.ge.s32.totalorder %s10, 4
    %s17 = sphi 0, %s29
    %s18 = sphi 0, %s25
    %s19 = sphi 0, %s17
    %s20 = sphi 0, %s18
    %s21 = sphi 0, %s19
    %s22 = sphi 0, %s20
    %s34 = sphi 0, %s36
    %s37 = sphi 0, %s34
    %s38 = sphi 0, %s37
    %s54 = sphi 0, %s38
    %s58 = sphi 0, %s58
    %s60 = sphi 0, %s58
    %s61 = sphi 0, %s60
    %s75 = sphi 0, %s61
    %s83 = sphi 0, %s85
    %s86 = sphi 0, %s83
    %s87 = sphi 0, %s86
    %s103 = sphi 0, %s87
    %s111 = sphi 0, %s113
    %s114 = sphi 0, %s111
    %s115 = sphi 0, %s114
    %s131 = sphi 0, %s115
  $region4: #{block_forward.2} parent=0 // loop_header_branch
    %13 = sbr.rel (%p11) target = $region8
  $region5: #{block_forward.2} parent=0 // loop_body
    %s15 = ssub.s32 %s10, 1
    %s16 = ssub.s32 %s10, 2
    %s23 = sadd.s32 1, %s18
    %p24 = scmp.ge.s32.totalorder %s23, 1
    %s25 = scalar_select %p24, 0, %s23
    %s26 = sadd.s32 1, %s17
    %s27 = scalar_select %p24, %s26, %s17
    %p28 = scmp.ge.s32.totalorder %s27, 2
    %s29 = scalar_select %p28, 0, %s27
    %s30 = ssub.s32 %s17, %s29
    %s31 = ssub.s32 %s18, %s25
    %s32 = sor.u32 %s30, %s31
    %p33 = scmp.eq.s32.totalorder %s32, 0
    %s35 = sadd.s32 %s34, 1
    %s36 = scalar_select %p33, %s34, %s35
    %p39 = pneg %p33
    %p40 = scmp.eq.s32.totalorder %s10, 1
    %p41 = por %p39, %p40
    %p42 = scmp.ne.s32.totalorder %s34, %s37
    %p43 = scmp.eq.s32.totalorder %s10, 0
    %p44 = por %p42, %p43
    %p45 = scmp.ne.s32.totalorder %s34, %s37
    %p46 = scmp.eq.s32.totalorder %s15, 1
    %p47 = por %p45, %p46
    %p48 = scmp.ne.s32.totalorder %s37, %s38
    %p49 = scmp.eq.s32.totalorder %s15, 0
    %p50 = por %p48, %p49
    %p51 = scmp.ne.s32.totalorder %s37, %s38
    %p52 = scmp.eq.s32.totalorder %s16, 1
    %p53 = por %p51, %p52
    %p55 = scmp.ne.s32.totalorder %s38, %s54
    %p56 = scmp.eq.s32.totalorder %s16, 0
    %p57 = por %p55, %p56
    %s59 = sadd.s32 %s58, 1
    %p62 = scmp.eq.s32.totalorder %s10, 1
    %p63 = scmp.ne.s32.totalorder %s58, %s60
    %p64 = scmp.eq.s32.totalorder %s10, 0
    %p65 = por %p63, %p64
    %p66 = scmp.ne.s32.totalorder %s58, %s60
    %p67 = scmp.eq.s32.totalorder %s15, 1
    %p68 = por %p66, %p67
    %p69 = scmp.ne.s32.totalorder %s60, %s61
    %p70 = scmp.eq.s32.totalorder %s15, 0
    %p71 = por %p69, %p70
    %p72 = scmp.ne.s32.totalorder %s60, %s61
    %p73 = scmp.eq.s32.totalorder %s16, 1
    %p74 = por %p72, %p73
    %p76 = scmp.ne.s32.totalorder %s61, %s75
    %p77 = scmp.eq.s32.totalorder %s16, 0
    %p78 = por %p76, %p77
    %s79 = ssub.s32 %s17, %s29
    %s80 = ssub.s32 %s18, %s25
    %s81 = sor.u32 %s79, %s80
    %p82 = scmp.eq.s32.totalorder %s81, 0
    %s84 = sadd.s32 %s83, 1
    %s85 = scalar_select %p82, %s83, %s84
    %p88 = pneg %p82
    %p89 = scmp.eq.s32.totalorder %s10, 1
    %p90 = por %p88, %p89
    %p91 = scmp.ne.s32.totalorder %s83, %s86
    %p92 = scmp.eq.s32.totalorder %s10, 0
    %p93 = por %p91, %p92
    %p94 = scmp.ne.s32.totalorder %s83, %s86
    %p95 = scmp.eq.s32.totalorder %s15, 1
    %p96 = por %p94, %p95
    %p97 = scmp.ne.s32.totalorder %s86, %s87
    %p98 = scmp.eq.s32.totalorder %s15, 0
    %p99 = por %p97, %p98
    %p100 = scmp.ne.s32.totalorder %s86, %s87
    %p101 = scmp.eq.s32.totalorder %s16, 1
    %p102 = por %p100, %p101
    %p104 = scmp.ne.s32.totalorder %s87, %s103
    %p105 = scmp.eq.s32.totalorder %s16, 0
    %p106 = por %p104, %p105
    %s107 = ssub.s32 %s17, %s29
    %s108 = ssub.s32 %s18, %s25
    %s109 = sor.u32 %s107, %s108
    %p110 = scmp.eq.s32.totalorder %s109, 0
    %s112 = sadd.s32 %s111, 1
    %s113 = scalar_select %p110, %s111, %s112
    %p116 = pneg %p110
    %p117 = scmp.eq.s32.totalorder %s10, 1
    %p118 = por %p116, %p117
    %p119 = scmp.ne.s32.totalorder %s111, %s114
    %p120 = scmp.eq.s32.totalorder %s10, 0
    %p121 = por %p119, %p120
    %p122 = scmp.ne.s32.totalorder %s111, %s114
    %p123 = scmp.eq.s32.totalorder %s15, 1
    %p124 = por %p122, %p123
    %p125 = scmp.ne.s32.totalorder %s114, %s115
    %p126 = scmp.eq.s32.totalorder %s15, 0
    %p127 = por %p125, %p126
    %p128 = scmp.ne.s32.totalorder %s114, %s115
    %p129 = scmp.eq.s32.totalorder %s16, 1
    %p130 = por %p128, %p129
    %p132 = scmp.ne.s32.totalorder %s115, %s131
    %p133 = scmp.eq.s32.totalorder %s16, 0
    %p134 = por %p132, %p133
    %p135 = scmp.le.s32.totalorder 1, %s10
    %p136 = scmp.lt.s32.totalorder %s10, 3
    %p137 = pnand %p135, %p136
    %p138 = pneg %p137
    // Predicated region
    $region9: #{block_forward.2} parent=5 // pred_check
      _
    $region10: #{block_forward.2} parent=5 // pred_check_branch
      %140 = sbr.rel (%p137) target = $region12
    $region11: #{block_forward.2} parent=5 // pred_region
      %s141 = ssub.s32 %s10, 1
      // Predicated region
      $region13: #{block_forward.2} parent=11 // pred_check
        %p142 = pneg %p71
      $region14: #{block_forward.2} parent=11 // pred_check_branch
        %144 = sbr.rel (%p142) target = $region16
      $region15: #{block_forward.2} parent=11 // pred_region
        _
      $region16: #{block_forward.2} parent=11 // pred_fallthru
        _
    $region12: #{block_forward.2} parent=5 // pred_fallthru
      _
    %p145 = scmp.lt.s32.totalorder %s10, 2
    // Predicated region
    $region17: #{block_forward.2} parent=5 // pred_check
      %p146 = pneg %p145
    $region18: #{block_forward.2} parent=5 // pred_check_branch
      %148 = sbr.rel (%p146) target = $region20
    $region19: #{block_forward.2} parent=5 // pred_region
      // Predicated region
      $region21: #{block_forward.2} parent=19 // pred_check
        %p149 = pneg %p44
      $region22: #{block_forward.2} parent=19 // pred_check_branch
        %151 = sbr.rel (%p149) target = $region24
      $region23: #{block_forward.2} parent=19 // pred_region
        %p152 = scmp.lt.s32.totalorder %s17, 1
        %s153 = scalar_select %p152, %s17, 1
        %p154 = scmp.lt.s32.totalorder %s18, 0
        %s155 = scalar_select %p154, %s18, 0
        %s156 = smul.addr %s153, 2
        %s157 = sadd.s32 %s155, %s156
        %s158 = smul.addr %s157, 4
        %s159 = scalar_lea.vmem %s0, %s158
      $region24: #{block_forward.2} parent=19 // pred_fallthru
        _
    $region20: #{block_forward.2} parent=5 // pred_fallthru
      _
    %p160 = scmp.le.s32.totalorder 1, %s10
    %p161 = scmp.lt.s32.totalorder %s10, 3
    %p162 = pnand %p160, %p161
    %p163 = pneg %p162
    // Predicated region
    $region25: #{block_forward.2} parent=5 // pred_check
      _
    $region26: #{block_forward.2} parent=5 // pred_check_branch
      %165 = sbr.rel (%p162) target = $region28
    $region27: #{block_forward.2} parent=5 // pred_region
      %s166 = ssub.s32 %s10, 1
      %p167 = scmp.lt.s32.totalorder %s19, 1
      %s168 = scalar_select %p167, %s19, 1
      %p169 = scmp.lt.s32.totalorder %s20, 0
      %s170 = scalar_select %p169, %s20, 0
      %s171 = smul.addr %s168, 2
      %s172 = sadd.s32 %s170, %s171
      %s173 = smul.addr %s172, 4
      %s174 = scalar_lea.vmem %s0, %s173
      %p175 = pneg %p50
      %p176 = pneg %p47
      %p177 = pneg %p71
      %p178 = pneg %p68
      %p179 = pneg %p99
      %p180 = pneg %p96
      %p181 = scmp.lt.s32.totalorder %s19, 1
      %s182 = scalar_select %p181, %s19, 1
      %p183 = scmp.lt.s32.totalorder %s20, 0
      %s184 = scalar_select %p183, %s20, 0
      %s185 = sadd.s32 %s184, %s182
      %s186 = smul.addr %s185, 8
      %s187 = scalar_lea.vmem %s2, %s186
      %p188 = pneg %p127
      %p189 = pneg %p124
      %p190 = scmp.lt.s32.totalorder %s19, 1
      %s191 = scalar_select %p190, %s19, 1
      %p192 = scmp.lt.s32.totalorder %s20, 0
      %s193 = scalar_select %p192, %s20, 0
      %s194 = sadd.s32 %s193, %s191
      %s195 = smul.addr %s194, 8
      %s196 = scalar_lea.vmem %s3, %s195
      %p197 = scmp.lt.s32.totalorder %s19, 1
      %s198 = scalar_select %p197, %s19, 1
      %p199 = scmp.lt.s32.totalorder %s20, 0
      %s200 = scalar_select %p199, %s20, 0
      %s201 = smul.addr %s198, 2
      %s202 = sadd.s32 %s200, %s201
      %s203 = smul.addr %s202, 4
      %s204 = scalar_lea.vmem %s0, %s203
      %p205 = scmp.lt.s32.totalorder %s19, 1
      %s206 = scalar_select %p205, %s19, 1
      %p207 = scmp.lt.s32.totalorder %s20, 0
      %s208 = scalar_select %p207, %s20, 0
      %s209 = sadd.s32 %s208, %s206
      %s210 = smul.addr %s209, 8
      %s211 = scalar_lea.vmem %s2, %s210
      %p212 = scmp.lt.s32.totalorder %s19, 1
      %s213 = scalar_select %p212, %s19, 1
      %p214 = scmp.lt.s32.totalorder %s20, 0
      %s215 = scalar_select %p214, %s20, 0
      %s216 = sadd.s32 %s215, %s213
      %s217 = smul.addr %s216, 8
      %s218 = scalar_lea.vmem %s3, %s217
      %v220 = vld [vmem:[%s1] sm:$0xf]
      %v221 = vld [vmem:[%s204] sm:$0xf]
      %v222 = vld [vmem:[%s204 + $0x4] sm:$0x3]
      %v225 = vunpack.c.l.b16 %v221
      %v226 = vunpack.c.l.b16 %v222
      %v227 = vpack.c.b16 %v226, %v225
      %vm228 = vcmask 97280
      %v230 = vsel %vm228, %v220, 0
      %vm232 = vcmask 1045504
      %v234 = vsel %vm232, %v227, 0
      %236 = vmatprep.subr.bf16.mxu0 0
      %237 = vmatpush1.bf16.msra.mxu0 %v234
      %238 = vmatprep.subr.bf16.mxu0 0
      %239 = vmatpush1.bf16.msra.mxu0 0
      %240 = vmatprep.subr.bf16.mxu0 0
      %241 = vmatpush1.bf16.msra.mxu0 0
      %242 = vmatprep.subr.bf16.mxu0 0
      %243 = vmatpush1.bf16.msra.mxu0 0
      %244 = vmatprep.subr.bf16.mxu0 0
      %245 = vmatpush1.bf16.msra.mxu0 0
      %246 = vmatprep.subr.bf16.mxu0 0
      %247 = vmatpush1.bf16.msra.mxu0 0
      %248 = vmatprep.subr.bf16.mxu0 0
      %249 = vmatpush1.bf16.msra.mxu0 0
      %250 = vmatprep.subr.bf16.mxu0 0
      %251 = vmatpush1.bf16.msra.mxu0 0
      %252 = vmatprep.subr.bf16.mxu0 0
      %253 = vmatpush1.bf16.msra.mxu0 0
      %254 = vmatprep.subr.bf16.mxu0 0
      %255 = vmatpush1.bf16.msra.mxu0 0
      %256 = vmatprep.subr.bf16.mxu0 0
      %257 = vmatpush1.bf16.msra.mxu0 0
      %258 = vmatprep.subr.bf16.mxu0 0
      %259 = vmatpush1.bf16.msra.mxu0 0
      %260 = vmatprep.subr.bf16.mxu0 0
      %261 = vmatpush1.bf16.msra.mxu0 0
      %262 = vmatprep.subr.bf16.mxu0 0
      %263 = vmatpush1.bf16.msra.mxu0 0
      %264 = vmatprep.subr.bf16.mxu0 0
      %265 = vmatpush1.bf16.msra.mxu0 0
      %266 = vmatprep.subr.bf16.mxu0 0
      %267 = vmatpush1.bf16.msra.mxu0 0
      %268 = vmatprep.mubr.bf16.mxu0 0
      %269 = vmatmul.mubr.bf16.gmra.mrb[0].mxu0 %v230
      %v270 = vpop.f32.mrb[0].mxu0
      %v271 = vadd.f32 0.0, %v270
      %v272 = vpop.f32.mrb[0].mxu0
      %v273 = vpop.f32.mrb[0].mxu0
      %v274 = vpop.f32.mrb[0].mxu0
      %275 = vdwg.mxu0
      %276 = vadd.xlane.f32.xlu0 %v271
      %v277 = vpop.xlane.xlu0 %276
      %vm278 = vcmask 7168
      %279 = vst.msk [vmem:[%s211] sm:$0xff] %vm278, %v277
      %v280 = vmul.f32 %v271, %v271
      %281 = vadd.xlane.f32.xlu0 %v280
      %v282 = vpop.xlane.xlu0 %281
      %283 = vst.msk [vmem:[%s218] sm:$0xff] %vm278, %v282
      %p284 = scmp.lt.s32.totalorder %s19, 1
      %s285 = scalar_select %p284, %s19, 1
      %p286 = scmp.lt.s32.totalorder %s20, 0
      %s287 = scalar_select %p286, %s20, 0
      %s288 = sadd.s32 %s287, %s285
      %s289 = smul.addr %s288, 8
      %s290 = scalar_lea.vmem %s2, %s289
      %p291 = scmp.lt.s32.totalorder %s19, 1
      %s292 = scalar_select %p291, %s19, 1
      %p293 = scmp.lt.s32.totalorder %s20, 0
      %s294 = scalar_select %p293, %s20, 0
      %s295 = sadd.s32 %s294, %s292
      %s296 = smul.addr %s295, 8
      %s297 = scalar_lea.vmem %s3, %s296
      // Predicated region
      $region29: #{block_forward.2} parent=27 // pred_check
        %p298 = pneg %p96
      $region30: #{block_forward.2} parent=27 // pred_check_branch
        %300 = sbr.rel (%p298) target = $region32
      $region31: #{block_forward.2} parent=27 // pred_region
        _
      $region32: #{block_forward.2} parent=27 // pred_fallthru
        _
      // Predicated region
      $region33: #{block_forward.2} parent=27 // pred_check
        %p301 = pneg %p124
      $region34: #{block_forward.2} parent=27 // pred_check_branch
        %303 = sbr.rel (%p301) target = $region36
      $region35: #{block_forward.2} parent=27 // pred_region
        _
      $region36: #{block_forward.2} parent=27 // pred_fallthru
        _
    $region28: #{block_forward.2} parent=5 // pred_fallthru
      _
    %p304 = scmp.le.s32.totalorder 2, %s10
    // Predicated region
    $region37: #{block_forward.2} parent=5 // pred_check
      %p305 = pneg %p304
    $region38: #{block_forward.2} parent=5 // pred_check_branch
      %307 = sbr.rel (%p305) target = $region40
    $region39: #{block_forward.2} parent=5 // pred_region
      %s308 = ssub.s32 %s10, 2
      // Predicated region
      $region41: #{block_forward.2} parent=39 // pred_check
        %p309 = pneg %p102
      $region42: #{block_forward.2} parent=39 // pred_check_branch
        %311 = sbr.rel (%p309) target = $region44
      $region43: #{block_forward.2} parent=39 // pred_region
        %p312 = scmp.lt.s32.totalorder %s21, 1
        %s313 = scalar_select %p312, %s21, 1
        %p314 = scmp.lt.s32.totalorder %s22, 0
        %s315 = scalar_select %p314, %s22, 0
        %s316 = sadd.s32 %s315, %s313
        %s317 = smul.addr %s316, 8
        %s318 = scalar_lea.vmem %s2, %s317
      $region44: #{block_forward.2} parent=39 // pred_fallthru
        _
      // Predicated region
      $region45: #{block_forward.2} parent=39 // pred_check
        %p319 = pneg %p130
      $region46: #{block_forward.2} parent=39 // pred_check_branch
        %321 = sbr.rel (%p319) target = $region48
      $region47: #{block_forward.2} parent=39 // pred_region
        %p322 = scmp.lt.s32.totalorder %s21, 1
        %s323 = scalar_select %p322, %s21, 1
        %p324 = scmp.lt.s32.totalorder %s22, 0
        %s325 = scalar_select %p324, %s22, 0
        %s326 = sadd.s32 %s325, %s323
        %s327 = smul.addr %s326, 8
        %s328 = scalar_lea.vmem %s3, %s327
      $region48: #{block_forward.2} parent=39 // pred_fallthru
        _
    $region40: #{block_forward.2} parent=5 // pred_fallthru
      _
  $region6: #{block_forward.2} parent=0 // loop_footer
    %s14 = sadd.s32 1, %s10
  $region7: #{block_forward.2} parent=0 // loop_footer_branch
    %9 = sbr.rel target = $region3
  $region8: #{block_forward.2} parent=0 // loop_exit
    _

</llo_original>
